<compile_context>
chip_gen: v6e
topology: v6e:2x2x1
jax: 0.10.0
libtpu: 0.0.40
codegen_flags: <defaults>
</compile_context>

<pallas_src>
import jax
import jax.numpy as jnp
from jax.experimental import pallas as pl
from jax.experimental.pallas import tpu as pltpu


def _div_kernel(a_ref, b_ref, o_ref):
    # Cast fused into the kernel (saves a separate XLA convert -> HBM round
    # trip for integer / bf16 inputs; no-op for f32).
    # Exact IEEE divide: parity with torch.div (inf/nan on zero denominators).
    # Deliberately NOT pl.reciprocal(approx=True) -- mem-bound anyway.
    o_ref[...] = a_ref[...].astype(o_ref.dtype) / b_ref[...].astype(o_ref.dtype)


def _pick_width(n):
    # Widest lane-dense last dim that divides n -> unmasked vst stores.
    for w in (1024, 512, 256, 128):
        if n % w == 0:
            return w
    return 128


def div_tensor_example(a, b):
    """Returns (a / b, a / b, a / b) exactly like the PyTorch module."""
    assert a.shape == b.shape, "this synthetic kernel assumes same-shape inputs"
    # TODO(synk): torch.div broadcasting semantics are not covered here.
    orig_shape = a.shape

    # PyTorch true division promotes integer inputs to (default) float.
    out_dtype = jnp.promote_types(a.dtype, b.dtype)
    if not jnp.issubdtype(out_dtype, jnp.floating):
        out_dtype = jnp.float32
    out_itemsize = jnp.dtype(out_dtype).itemsize

    # ---- flatten to a lane-dense 2-D slab -------------------------------
    n = a.size
    a1 = a.reshape(n)
    b1 = b.reshape(n)
    lanes = 128
    pad = (-n) % lanes
    if pad:
        # Pad a with 0 and b with 1 so the padded lanes stay finite.
        a1 = jnp.pad(a1, (0, pad))
        b1 = jnp.pad(b1, (0, pad), constant_values=1)
    n_pad = n + pad

    width = _pick_width(n_pad)
    rows = n_pad // width
    a2 = a1.reshape(rows, width)
    b2 = b1.reshape(rows, width)

    n_elems = rows * width
    bytes_accessed = a2.size * a2.dtype.itemsize + b2.size * b2.dtype.itemsize \
        + n_elems * out_itemsize
    cost = pl.CostEstimate(flops=n_elems, transcendentals=n_elems,
                           bytes_accessed=bytes_accessed)

    # Target ~2 MiB per array per tile (amortizes ~0.35us/step overhead and
    # stays well inside v7x's 64 MiB VMEM even with double-buffering of the
    # 2 inputs + 1 output). Round to a multiple of 8 sublanes.
    block_rows = max(8, ((2 * 1024 * 1024) // (width * out_itemsize)) // 8 * 8)

    if rows <= block_rows:
        # Small problem (the fixture shape): single grid-less invocation.
        q2 = pl.pallas_call(
            _div_kernel,
            out_shape=jax.ShapeDtypeStruct((rows, width), out_dtype),
            in_specs=[
                pl.BlockSpec(memory_space=pltpu.MemorySpace.VMEM),
                pl.BlockSpec(memory_space=pltpu.MemorySpace.VMEM),
            ],
            out_specs=pl.BlockSpec(memory_space=pltpu.MemorySpace.VMEM),
            cost_estimate=cost,
        )(a2, b2)
    else:
        # Generalized large-tensor path: 1-D grid over rows, lane-dense tiles,
        # parallel axis for megacore / 2-TC sharding.
        grid = (pl.cdiv(rows, block_rows),)
        q2 = pl.pallas_call(
            _div_kernel,
            out_shape=jax.ShapeDtypeStruct((rows, width), out_dtype),
            grid_spec=pltpu.PrefetchScalarGridSpec(
                num_scalar_prefetch=0,
                grid=grid,
                in_specs=[
                    pl.BlockSpec((block_rows, width), lambda i: (i, 0)),
                    pl.BlockSpec((block_rows, width), lambda i: (i, 0)),
                ],
                out_specs=pl.BlockSpec((block_rows, width), lambda i: (i, 0)),
            ),
            compiler_params=pltpu.CompilerParams(
                dimension_semantics=("parallel",)),
            cost_estimate=cost,
        )(a2, b2)

    q = q2.reshape(n_pad)
    if pad:
        q = q[:n]
    q = q.reshape(orig_shape)

    # The three results of the PyTorch module are numerically identical;
    # return the single computed quotient three times.
    return (q, q, q)


if __name__ == "__main__":
    key = jax.random.PRNGKey(0)
    ka, kb = jax.random.split(key)
    shape = (2, 4, 16, 16)  # B, C, H, W
    a = jax.random.normal(ka, shape, dtype=jnp.float32)
    # Keep denominators away from zero for a stable numerical check.
    b = jax.random.uniform(kb, shape, dtype=jnp.float32, minval=0.5, maxval=2.0)

    r0, r1, r2 = div_tensor_example(a, b)
    jax.block_until_ready((r0, r1, r2))

    ref = a / b
    assert r0.shape == shape and r1.shape == shape and r2.shape == shape
    assert jnp.allclose(r0, ref, rtol=1e-6, atol=1e-6)
    assert jnp.allclose(r1, ref, rtol=1e-6, atol=1e-6)
    assert jnp.allclose(r2, ref, rtol=1e-6, atol=1e-6)
    print("KERNEL_OK")
</pallas_src>

<mosaic_0001>
module attributes {stable_mosaic.version = 11 : i64} {
  func.func @_div_kernel(%arg0: memref<2x1024xf32, #tpu.memory_space<vmem>>, %arg1: memref<2x1024xf32, #tpu.memory_space<vmem>>, %arg2: memref<2x1024xf32, #tpu.memory_space<vmem>>) attributes {dimension_semantics = [], scalar_prefetch = 0 : i64, scratch_operands = 0 : i64, tpu.core_type = #tpu.core_type<tc>} {
    %c0 = arith.constant 0 : index
    %c0_0 = arith.constant 0 : index
    %0 = vector.load %arg0[%c0, %c0_0] : memref<2x1024xf32, #tpu.memory_space<vmem>>, vector<2x1024xf32>
    %c0_1 = arith.constant 0 : index
    %c0_2 = arith.constant 0 : index
    %1 = vector.load %arg1[%c0_1, %c0_2] : memref<2x1024xf32, #tpu.memory_space<vmem>>, vector<2x1024xf32>
    %2 = arith.divf %0, %1 : vector<2x1024xf32>
    %c0_3 = arith.constant 0 : index
    %c0_4 = arith.constant 0 : index
    %3 = vector.load %arg2[%c0_3, %c0_4] : memref<2x1024xf32, #tpu.memory_space<vmem>>, vector<2x1024xf32>
    tpu.vector_store %arg2[%c0_3, %c0_4], %2 {strides = array<i32>} : memref<2x1024xf32, #tpu.memory_space<vmem>>, vector<2x1024xf32>,
    return
  }
}

</mosaic_0001>

<llo_original>
// kernel: tpu_custom_call.1
$region0: #{tpu_custom_call.1}
  #allocation0 [shape = 'u32[]', space=smem, size = 0x4, offset = 0x4, fixed_abs, tag = 'smem constant byte address 0x4 - core index']
  #allocation1 [shape = 'u32[144,128]{1,0:T(1,128)}', space=vmem, size = 0x12000, scoped, tag = 'internal scratch']
  %s0 = inlined_call_operand.hbm [shape: f32[2,1024], index: 0, kind: input, shape index: {}]
  %s1 = inlined_call_operand.hbm [shape: f32[2,1024], index: 1, kind: input, shape index: {}]
  %s2 = inlined_call_operand.hbm [shape: f32[2,1024], index: 2, kind: output, shape index: {}]
  %s3 = sld [smem:[#allocation0]]
  $region26: #{tpu_custom_call.1} parent=0
    _
  %s5 = ssub.s32 1, %s3
  %s6 = scalar_select 0, %s5, %s3
  $region1: #{tpu_custom_call.1} parent=0
    #allocation2 [shape = 'u8[8192]{0}', space=vmem, size = 0x2000, scoped, tag = 'input window, operand 0, single buffered']
    #allocation3 [shape = 's32[1]{0}', space=sflag, size = 0x4, scoped, tag = 'scoped memory for tpu_custom_call.1']
    #allocation4 [shape = 's32[1]{0}', space=sflag, size = 0x4, scoped, tag = 'scoped memory for tpu_custom_call.1']
    #allocation5 [shape = 'u8[8192]{0}', space=vmem, size = 0x2000, scoped, tag = 'input window, operand 1, single buffered']
    #allocation6 [shape = 's32[1]{0}', space=sflag, size = 0x4, scoped, tag = 'scoped memory for tpu_custom_call.1']
    #allocation7 [shape = 'u8[8192]{0}', space=vmem, size = 0x2000, scoped, tag = 'output window, operand 0, single buffered']
    %7 = vsyncpa [#allocation3], 0
    %8 = vsyncpa [#allocation6], 0
    %9 = vsyncpa [#allocation4], 0
    // Predicated region
    $region2: #{tpu_custom_call.1} parent=1 // pred_check
      _
    $region3: #{tpu_custom_call.1} parent=1 // pred_check_branch
      %11 = sbr.rel (0) target = $region5
    $region4: #{tpu_custom_call.1} parent=1 // pred_region
      %s13 = ssub.s32 256, 256
      %14 = vsyncadd [#allocation3], %s13
      %s16 = sshll.u32 [#allocation2], 4
      %s17 = int_to_ptr.vmem [resolvable:$true] %s16
      %19 = dma.hbm_to_vmem [thread:$0]  %s0, 256, %s17, [#allocation3]
    $region5: #{tpu_custom_call.1} parent=1 // pred_fallthru
      _
    // Predicated region
    $region6: #{tpu_custom_call.1} parent=1 // pred_check
      _
    $region7: #{tpu_custom_call.1} parent=1 // pred_check_branch
      %21 = sbr.rel (0) target = $region9
    $region8: #{tpu_custom_call.1} parent=1 // pred_region
      %s23 = ssub.s32 256, 256
      %24 = vsyncadd [#allocation6], %s23
      %s26 = sshll.u32 [#allocation5], 4
      %s27 = int_to_ptr.vmem [resolvable:$true] %s26
      %29 = dma.hbm_to_vmem [thread:$0]  %s1, 256, %s27, [#allocation6]
    $region9: #{tpu_custom_call.1} parent=1 // pred_fallthru
      _
    // Predicated region
    $region10: #{tpu_custom_call.1} parent=1 // pred_check
      _
    $region11: #{tpu_custom_call.1} parent=1 // pred_check_branch
      %31 = sbr.rel (0) target = $region13
    $region12: #{tpu_custom_call.1} parent=1 // pred_region
      %32 = dma.done [#allocation3], 256
    $region13: #{tpu_custom_call.1} parent=1 // pred_fallthru
      _
    // Predicated region
    $region14: #{tpu_custom_call.1} parent=1 // pred_check
      _
    $region15: #{tpu_custom_call.1} parent=1 // pred_check_branch
      %34 = sbr.rel (0) target = $region17
    $region16: #{tpu_custom_call.1} parent=1 // pred_region
      %35 = dma.done [#allocation6], 256
    $region17: #{tpu_custom_call.1} parent=1 // pred_fallthru
      _
    %v36 = vld [vmem:[#allocation2] sm:$0xff]
    %v37 = vld [vmem:[#allocation2 + $0x8] sm:$0xff]
    %v38 = vld [vmem:[#allocation5] sm:$0xff]
    %v39 = vld [vmem:[#allocation5 + $0x8] sm:$0xff]
    %v40 = vrcp.pop %v38
    %v41 = vmul.f32 %v36, %v40
    %v42 = vrcp.pop %v39
    %v43 = vmul.f32 %v37, %v42
    %44 = vst [vmem:[#allocation7] sm:$0xff] %v41
    %45 = vst [vmem:[#allocation7 + $0x8] sm:$0xff] %v43
    // Predicated region
    $region18: #{tpu_custom_call.1} parent=1 // pred_check
      _
    $region19: #{tpu_custom_call.1} parent=1 // pred_check_branch
      %47 = sbr.rel (0) target = $region21
    $region20: #{tpu_custom_call.1} parent=1 // pred_region
      %s49 = ssub.s32 256, 256
      %50 = vsyncadd [#allocation4], %s49
      %s52 = sshll.u32 [#allocation7], 4
      %s53 = int_to_ptr.vmem [resolvable:$true] %s52
      %55 = dma.vmem_to_hbm [thread:$0]  %s53, 256, %s2, [#allocation4]
    $region21: #{tpu_custom_call.1} parent=1 // pred_fallthru
      _
    // Predicated region
    $region22: #{tpu_custom_call.1} parent=1 // pred_check
      _
    $region23: #{tpu_custom_call.1} parent=1 // pred_check_branch
      %57 = sbr.rel (0) target = $region25
    $region24: #{tpu_custom_call.1} parent=1 // pred_region
      %58 = dma.done [#allocation4], 256
    $region25: #{tpu_custom_call.1} parent=1 // pred_fallthru
      _
    %59 = vsyncpa [#allocation3], 1
    %60 = vsyncpa [#allocation6], 1
    %61 = vsyncpa [#allocation4], 1

</llo_original>
